<compile_context>
chip_gen: v6e
topology: v6e:2x2x1
jax: 0.10.0
libtpu: 0.0.40
codegen_flags: <defaults>
</compile_context>

<pallas_src>
import functools
import math

import jax
import jax.numpy as jnp
from jax.experimental import pallas as pl
from jax.experimental.pallas import tpu as pltpu


def _round_up(x, m):
    return ((x + m - 1) // m) * m


def _num_tensorcores():
    """Best-effort TensorCores-per-chip (2 on megacore chips, else 1)."""
    try:
        info = pltpu.get_tpu_info()
        for name in ("num_cores", "core_count", "tensorcores_per_chip",
                     "num_tensorcores"):
            v = getattr(info, name, None)
            if isinstance(v, int) and v > 0:
                return v
    except Exception:
        pass
    try:
        v = getattr(jax.devices()[0], "num_cores", None)
        if isinstance(v, int) and v > 0:
            return v
    except Exception:
        pass
    return 1


def _lane_pack_factor(D, M):
    """Rows packed per output row so the packed channel dim is lane-dense."""
    if D % 128 == 0:
        return 1
    k = math.lcm(D, 128) // D
    if k <= 8 and M % k == 0:
        return k
    return 1  # fall back: unpadded output block (masked stores, no extra bytes)


def _matmul_kernel(x_ref, w_ref, o_ref, *, precision):
    # x_ref: (TM, K2)  w_ref: (K2, TD)  o_ref: (TM, TD) -- a single MXU matmul.
    o_ref[...] = jnp.dot(
        x_ref[...], w_ref[...],
        preferred_element_type=jnp.float32,
        precision=precision,
    ).astype(o_ref.dtype)


def _choose_tiles(M2, K2, D2, out_itemsize):
    # Output-channel tile: split only when D2 is large and 128-aligned, giving
    # the megacore a second parallel axis while keeping stores lane-dense.
    if D2 >= 512 and D2 % 256 == 0:
        TD = 256
    elif D2 >= 256 and D2 % 128 == 0:
        TD = 128
    else:
        TD = D2
    gd = pl.cdiv(D2, TD)

    # Row tile: budget against PHYSICAL (lane-padded) VMEM bytes:
    # 2x double-buffered x block + 2x double-buffered out block + ~1x slack
    # for the in-flight matmul result.  ~16 MiB of blocks stays well inside a
    # 48 MiB scoped limit on every generation (v7x has only 64 MiB VMEM/TC).
    x_row = _round_up(K2, 128) * 4
    o_row = _round_up(TD, 128) * out_itemsize
    per_row = 2 * x_row + 3 * o_row
    budget = 16 * 1024 * 1024
    tm = max(8, budget // per_row)
    tm = min(tm, 8192)          # multi-MiB output blocks (perf review target)
    tm = min(tm, M2)

    # Only force >=2 grid steps when the chip actually has >1 TensorCore.
    if gd == 1 and M2 >= 16 and _num_tensorcores() >= 2:
        tm = min(tm, pl.cdiv(M2, 2))

    if tm < M2:
        tm = max(8, (tm // 8) * 8)   # second-to-last block dim: multiple of 8
    return tm, TD


def time_d_embedding(x, weight, *, out_dtype=None,
                     precision=jax.lax.Precision.HIGHEST):
    """x: (..., L, c_in); weight: PyTorch Conv1d weight (d_model, c_in, 3).

    Returns (..., L, d_model): kernel-size-3 circular conv along L, no bias.
    Pass out_dtype=jnp.bfloat16 to halve HBM write traffic if tolerated.
    """
    *batch, L, C = x.shape
    D = weight.shape[0]
    out_dtype = x.dtype if out_dtype is None else out_dtype
    N = math.prod(batch) if batch else 1
    M = N * L

    # ---- hoisted prep (plain XLA): circular 3-tap shift + channel concat ----
    x_flat = x.reshape(N, L, C)
    x_cat = jnp.concatenate(
        [jnp.roll(x_flat, 1, axis=1), x_flat, jnp.roll(x_flat, -1, axis=1)],
        axis=-1)                                      # (N, L, 3C)
    x2d = x_cat.reshape(M, 3 * C)

    # Fused weight: (D, C, K) -> (K, C, D) -> (3C, D); row k*C+c pairs with
    # tap k of channel c in x_cat.
    w_fused = jnp.transpose(weight, (2, 1, 0)).reshape(3 * C, D).astype(x.dtype)

    # ---- lane packing for small / unaligned d_model --------------------------
    k = _lane_pack_factor(D, M)
    if k > 1:
        # Pack k consecutive rows into lanes: x -> (M/k, k*3C); block-diagonal
        # weight -> (k*3C, k*D).  Output (M/k, k*D) is lane-dense; un-packing
        # below is a free row-major reshape.
        x2d = x2d.reshape(M // k, k * 3 * C)
        w_big = (jnp.eye(k, dtype=w_fused.dtype)[:, None, :, None]
                 * w_fused[None, :, None, :]).reshape(k * 3 * C, k * D)
    else:
        w_big = w_fused
    M2, K2 = x2d.shape
    D2 = k * D

    TM, TD = _choose_tiles(M2, K2, D2, jnp.dtype(out_dtype).itemsize)
    grid = (pl.cdiv(M2, TM), pl.cdiv(D2, TD))

    out = pl.pallas_call(
        functools.partial(_matmul_kernel, precision=precision),
        out_shape=jax.ShapeDtypeStruct((M2, D2), out_dtype),
        grid_spec=pltpu.PrefetchScalarGridSpec(
            num_scalar_prefetch=0,
            grid=grid,
            in_specs=[
                pl.BlockSpec((TM, K2), lambda m, d: (m, 0)),
                # Constant along m -> weight stays VMEM-resident; re-DMA only
                # when the output-channel tile changes.
                pl.BlockSpec((K2, TD), lambda m, d: (0, d)),
            ],
            out_specs=pl.BlockSpec((TM, TD), lambda m, d: (m, d)),
        ),
        compiler_params=pltpu.CompilerParams(
            dimension_semantics=("parallel", "parallel"),
            vmem_limit_bytes=48 * 1024 * 1024,
        ),
        cost_estimate=pl.CostEstimate(
            flops=2 * M2 * K2 * D2,
            transcendentals=0,
            bytes_accessed=(x2d.dtype.itemsize * M2 * K2
                            + w_big.dtype.itemsize * K2 * D2
                            + jnp.dtype(out_dtype).itemsize * M2 * D2),
        ),
    )(x2d, w_big)

    # Free row-major reshape: (M/k, k*D) == (M, D) == (*batch, L, D).
    return out.reshape(*batch, L, D)


def _reference(x, weight):
    """Plain-JAX reference of the circular conv (channels-last)."""
    w = jnp.transpose(weight, (2, 1, 0))               # (3, C, D)
    hp = jax.lax.Precision.HIGHEST
    return (jnp.matmul(jnp.roll(x, 1, axis=-2), w[0], precision=hp)
            + jnp.matmul(x, w[1], precision=hp)
            + jnp.matmul(jnp.roll(x, -1, axis=-2), w[2], precision=hp))


if __name__ == "__main__":
    key = jax.random.PRNGKey(0)
    kx, kw, kw2 = jax.random.split(key, 3)

    # Deterministic Kaiming-normal init (fan_in, leaky_relu slope=0.01),
    # matching nn.init.kaiming_normal_ on a Conv1d weight (d_model, c_in, 3).
    c_in = 4
    B, S, L = 2, 3, 16
    fan_in = c_in * 3
    gain = math.sqrt(2.0 / (1.0 + 0.01 ** 2))
    std = gain / math.sqrt(fan_in)

    x = jax.random.normal(kx, (B, S, L, c_in), dtype=jnp.float32)

    # Primary: d_model multiple of 128 (natively lane-dense output).
    d_model = 128
    weight = std * jax.random.normal(kw, (d_model, c_in, 3), dtype=jnp.float32)
    y = jax.block_until_ready(time_d_embedding(x, weight))
    y_ref = _reference(x, weight)
    assert y.shape == (B, S, L, d_model), y.shape
    assert jnp.allclose(y, y_ref, atol=1e-4, rtol=1e-4), "mismatch (D=128)"

    # Secondary: d_model=32 exercises the lane-packing (k=4) path.
    d_small = 32
    weight2 = std * jax.random.normal(kw2, (d_small, c_in, 3), dtype=jnp.float32)
    y2 = jax.block_until_ready(time_d_embedding(x, weight2))
    y2_ref = _reference(x, weight2)
    assert y2.shape == (B, S, L, d_small), y2.shape
    assert jnp.allclose(y2, y2_ref, atol=1e-4, rtol=1e-4), "mismatch (D=32)"

    print("KERNEL_OK")
</pallas_src>

<mosaic_0001>
module attributes {stable_mosaic.version = 11 : i64} {
  func.func @_matmul_kernel(%arg0: i32, %arg1: i32, %arg2: memref<96x12xf32, #tpu.memory_space<vmem>>, %arg3: memref<12x128xf32, #tpu.memory_space<vmem>>, %arg4: memref<96x128xf32, #tpu.memory_space<vmem>>) attributes {dimension_semantics = [#tpu.dimension_semantics<parallel>, #tpu.dimension_semantics<parallel>], iteration_bounds = array<i64: 1, 1>, scalar_prefetch = 0 : i64, scratch_operands = 0 : i64, tpu.core_type = #tpu.core_type<tc>, window_params = [{transform_indices = @transform_0, window_bounds = array<i64: 96, 12>}, {transform_indices = @transform_1, window_bounds = array<i64: 12, 128>}, {transform_indices = @transform_2, window_bounds = array<i64: 96, 128>}]} {
    %c0 = arith.constant 0 : index
    %c0_0 = arith.constant 0 : index
    %0 = vector.load %arg2[%c0, %c0_0] : memref<96x12xf32, #tpu.memory_space<vmem>>, vector<96x12xf32>
    %c0_1 = arith.constant 0 : index
    %c0_2 = arith.constant 0 : index
    %1 = vector.load %arg3[%c0_1, %c0_2] : memref<12x128xf32, #tpu.memory_space<vmem>>, vector<12x128xf32>
    %cst = arith.constant dense<0.000000e+00> : vector<96x128xf32>
    %2 = tpu.matmul %0, %1, %cst {dimension_numbers = #tpu.dot_dimension_numbers<[1], [0], [0], [1], [0, 0, 1, 1], [], []>, precision = #tpu.contract_precision<fp32>} : vector<96x12xf32>, vector<12x128xf32>, vector<96x128xf32> -> vector<96x128xf32>
    %c0_3 = arith.constant 0 : index
    %c0_4 = arith.constant 0 : index
    %3 = vector.load %arg4[%c0_3, %c0_4] : memref<96x128xf32, #tpu.memory_space<vmem>>, vector<96x128xf32>
    tpu.vector_store %arg4[%c0_3, %c0_4], %2 {strides = array<i32>} : memref<96x128xf32, #tpu.memory_space<vmem>>, vector<96x128xf32>,
    return
  }
  func.func @transform_0(%arg0: i32, %arg1: i32) -> (i32, i32) {
    %c0_i32 = arith.constant 0 : i32
    %c0_i32_0 = arith.constant 0 : i32
    return %arg0, %c0_i32 : i32, i32
  }
  func.func @transform_1(%arg0: i32, %arg1: i32) -> (i32, i32) {
    %c0_i32 = arith.constant 0 : i32
    %c0_i32_0 = arith.constant 0 : i32
    return %c0_i32, %arg1 : i32, i32
  }
  func.func @transform_2(%arg0: i32, %arg1: i32) -> (i32, i32) {
    %c0_i32 = arith.constant 0 : i32
    return %arg0, %arg1 : i32, i32
  }
}

</mosaic_0001>

<llo_original>
// kernel: tpu_custom_call.1
$region0: #{tpu_custom_call.1}
  #allocation0 [shape = 'u32[]', space=smem, size = 0x4, offset = 0x4, fixed_abs, tag = 'smem constant byte address 0x4 - core index']
  #allocation1 [shape = 'u32[144,128]{1,0:T(1,128)}', space=vmem, size = 0x12000, scoped, tag = 'internal scratch']
  %s0 = inlined_call_operand.vmem [shape: f32[96,12], index: 0, kind: input, shape index: {}]
  %s1 = inlined_call_operand.vmem [shape: f32[12,128], index: 1, kind: input, shape index: {}]
  %s2 = inlined_call_operand.hbm [shape: f32[96,128], index: 2, kind: output, shape index: {}]
  %s3 = sld [smem:[#allocation0]]
  $region18: #{tpu_custom_call.1} parent=0
    _
  %s5 = ssub.s32 1, %s3
  %s6 = scalar_select 0, %s5, %s3
  $region1: #{tpu_custom_call.1} parent=0
    #allocation2 [shape = 'u8[49152]{0}', space=vmem, size = 0xc000, scoped, tag = 'output window, operand 0, single buffered']
    #allocation3 [shape = 's32[1]{0}', space=sflag, size = 0x4, scoped, tag = 'scoped memory for tpu_custom_call.1']
    %7 = vsyncpa [#allocation3], 0
    // Predicated region
    $region2: #{tpu_custom_call.1} parent=1 // pred_check
      _
    $region3: #{tpu_custom_call.1} parent=1 // pred_check_branch
      %9 = sbr.rel (0) target = $region5
    $region4: #{tpu_custom_call.1} parent=1 // pred_region
      _
    $region5: #{tpu_custom_call.1} parent=1 // pred_fallthru
      _
    // Predicated region
    $region6: #{tpu_custom_call.1} parent=1 // pred_check
      _
    $region7: #{tpu_custom_call.1} parent=1 // pred_check_branch
      %11 = sbr.rel (0) target = $region9
    $region8: #{tpu_custom_call.1} parent=1 // pred_region
      _
    $region9: #{tpu_custom_call.1} parent=1 // pred_fallthru
      _
    %v12 = vld [vmem:[%s0] sm:$0xff]
    %v13 = vld [vmem:[%s0 + $0x8] sm:$0xff]
    %v14 = vld [vmem:[%s0 + $0x10] sm:$0xff]
    %v15 = vld [vmem:[%s0 + $0x18] sm:$0xff]
    %v16 = vld [vmem:[%s0 + $0x20] sm:$0xff]
    %v17 = vld [vmem:[%s0 + $0x28] sm:$0xff]
    %v18 = vld [vmem:[%s0 + $0x30] sm:$0xff]
    %v19 = vld [vmem:[%s0 + $0x38] sm:$0xff]
    %v20 = vld [vmem:[%s0 + $0x40] sm:$0xff]
    %v21 = vld [vmem:[%s0 + $0x48] sm:$0xff]
    %v22 = vld [vmem:[%s0 + $0x50] sm:$0xff]
    %v23 = vld [vmem:[%s0 + $0x58] sm:$0xff]
    %v24 = vld [vmem:[%s1] sm:$0xff]
    %v25 = vld [vmem:[%s1 + $0x8] sm:$0xf]
    %vm26 = vcmask 97280
    %v28 = vsel %vm26, %v12, 0
    %v31 = vsel %vm26, %v13, 0
    %v34 = vsel %vm26, %v14, 0
    %v37 = vsel %vm26, %v15, 0
    %v40 = vsel %vm26, %v16, 0
    %v43 = vsel %vm26, %v17, 0
    %v46 = vsel %vm26, %v18, 0
    %v49 = vsel %vm26, %v19, 0
    %v52 = vsel %vm26, %v20, 0
    %v55 = vsel %vm26, %v21, 0
    %v58 = vsel %vm26, %v22, 0
    %v61 = vsel %vm26, %v23, 0
    %vm63 = vcmask 1043456
    %v65 = vsel %vm63, %v25, 0
    %67 = vmatprep.subr.mxu0 0.0
    %68 = vmatpush1.msra.mxu0 0.0
    %69 = vmatprep.subr.mxu0 0.0
    %70 = vmatpush1.msra.mxu0 0.0
    %71 = vmatprep.subr.mxu0 0.0
    %72 = vmatpush1.msra.mxu0 0.0
    %73 = vmatprep.subr.mxu0 0.0
    %74 = vmatpush1.msra.mxu0 0.0
    %75 = vmatprep.subr.mxu0 0.0
    %76 = vmatpush1.msra.mxu0 0.0
    %77 = vmatprep.subr.mxu0 0.0
    %78 = vmatpush1.msra.mxu0 0.0
    %79 = vmatprep.subr.mxu0 0.0
    %80 = vmatpush1.msra.mxu0 0.0
    %81 = vmatprep.subr.mxu0 0.0
    %82 = vmatpush1.msra.mxu0 0.0
    %83 = vmatprep.subr.mxu0 0.0
    %84 = vmatpush1.msra.mxu0 0.0
    %85 = vmatprep.subr.mxu0 0.0
    %86 = vmatpush1.msra.mxu0 0.0
    %87 = vmatprep.subr.mxu0 0.0
    %88 = vmatpush1.msra.mxu0 0.0
    %89 = vmatprep.subr.mxu0 0.0
    %90 = vmatpush1.msra.mxu0 0.0
    %91 = vmatprep.subr.mxu0 0.0
    %92 = vmatpush1.msra.mxu0 0.0
    %93 = vmatprep.subr.mxu0 0.0
    %94 = vmatpush1.msra.mxu0 0.0
    %95 = vmatprep.subr.mxu0 0.0
    %v96 = vand.u32 %v65, 4294901760
    %97 = vmatpush1.msra.mxu0 %v96
    %98 = vmatprep.subr.mxu0 0.0
    %v99 = vand.u32 %v24, 4294901760
    %100 = vmatpush1.msra.mxu0 %v99
    %101 = vmatprep.subr.mxu0 0.0
    %102 = vmatpush2.msra.mxu0 0.0
    %103 = vmatprep.subr.mxu0 0.0
    %104 = vmatpush2.msra.mxu0 0.0
    %105 = vmatprep.subr.mxu0 0.0
    %106 = vmatpush2.msra.mxu0 0.0
    %107 = vmatprep.subr.mxu0 0.0
    %108 = vmatpush2.msra.mxu0 0.0
    %109 = vmatprep.subr.mxu0 0.0
    %110 = vmatpush2.msra.mxu0 0.0
    %111 = vmatprep.subr.mxu0 0.0
    %112 = vmatpush2.msra.mxu0 0.0
    %113 = vmatprep.subr.mxu0 0.0
    %114 = vmatpush2.msra.mxu0 0.0
    %115 = vmatprep.subr.mxu0 0.0
    %116 = vmatpush2.msra.mxu0 0.0
    %117 = vmatprep.subr.mxu0 0.0
    %118 = vmatpush2.msra.mxu0 0.0
    %119 = vmatprep.subr.mxu0 0.0
    %120 = vmatpush2.msra.mxu0 0.0
    %121 = vmatprep.subr.mxu0 0.0
    %122 = vmatpush2.msra.mxu0 0.0
    %123 = vmatprep.subr.mxu0 0.0
    %124 = vmatpush2.msra.mxu0 0.0
    %125 = vmatprep.subr.mxu0 0.0
    %126 = vmatpush2.msra.mxu0 0.0
    %127 = vmatprep.subr.mxu0 0.0
    %128 = vmatpush2.msra.mxu0 0.0
    %129 = vmatprep.subr.mxu0 0.0
    %130 = vmatpush2.msra.mxu0 0.0
    %131 = vmatprep.subr.mxu0 0.0
    %132 = vmatpush2.msra.mxu0 0.0
    %133 = vmatprep.mubr.f32.mxu0 0.0
    %v134 = vand.u32 %v28, 4294901760
    %v135 = vsub.f32 %v28, %v134
    %v136 = vand.u32 %v135, 4294901760
    %v137 = vsub.f32 %v135, %v136
    %v138 = vand.u32 %v137, 4294901760
    %139 = vmatmul.mubr.f32.gmra.mxu0 %v138
    %v140 = vpop.f32.mrf.mxu0
    %v141 = vadd.f32 0.0, %v140
    %v142 = vpop.f32.mrf.mxu0
    %143 = vmatprep.mubr.f32.mxu0 0.0
    %v144 = vand.u32 %v31, 4294901760
    %v145 = vsub.f32 %v31, %v144
    %v146 = vand.u32 %v145, 4294901760
    %v147 = vsub.f32 %v145, %v146
    %v148 = vand.u32 %v147, 4294901760
    %149 = vmatmul.mubr.f32.gmra.mxu0 %v148
    %v150 = vpop.f32.mrf.mxu0
    %v151 = vadd.f32 0.0, %v150
    %v152 = vpop.f32.mrf.mxu0
    %153 = vmatprep.mubr.f32.mxu0 0.0
    %v154 = vand.u32 %v34, 4294901760
    %v155 = vsub.f32 %v34, %v154
    %v156 = vand.u32 %v155, 4294901760
    %v157 = vsub.f32 %v155, %v156
    %v158 = vand.u32 %v157, 4294901760
    %159 = vmatmul.mubr.f32.gmra.mxu0 %v158
    %v160 = vpop.f32.mrf.mxu0
    %v161 = vadd.f32 0.0, %v160
    %v162 = vpop.f32.mrf.mxu0
    %163 = vmatprep.mubr.f32.mxu0 0.0
    %v164 = vand.u32 %v37, 4294901760
    %v165 = vsub.f32 %v37, %v164
    %v166 = vand.u32 %v165, 4294901760
    %v167 = vsub.f32 %v165, %v166
    %v168 = vand.u32 %v167, 4294901760
    %169 = vmatmul.mubr.f32.gmra.mxu0 %v168
    %v170 = vpop.f32.mrf.mxu0
    %v171 = vadd.f32 0.0, %v170
    %v172 = vpop.f32.mrf.mxu0
    %173 = vmatprep.mubr.f32.mxu0 0.0
    %v174 = vand.u32 %v40, 4294901760
    %v175 = vsub.f32 %v40, %v174
    %v176 = vand.u32 %v175, 4294901760
    %v177 = vsub.f32 %v175, %v176
    %v178 = vand.u32 %v177, 4294901760
    %179 = vmatmul.mubr.f32.gmra.mxu0 %v178
    %v180 = vpop.f32.mrf.mxu0
    %v181 = vadd.f32 0.0, %v180
    %v182 = vpop.f32.mrf.mxu0
    %183 = vmatprep.mubr.f32.mxu0 0.0
    %v184 = vand.u32 %v43, 4294901760
    %v185 = vsub.f32 %v43, %v184
    %v186 = vand.u32 %v185, 4294901760
    %v187 = vsub.f32 %v185, %v186
    %v188 = vand.u32 %v187, 4294901760
    %189 = vmatmul.mubr.f32.gmra.mxu0 %v188
    %v190 = vpop.f32.mrf.mxu0
    %v191 = vadd.f32 0.0, %v190
    %v192 = vpop.f32.mrf.mxu0
    %193 = vmatprep.mubr.f32.mxu0 0.0
    %v194 = vand.u32 %v46, 4294901760
    %v195 = vsub.f32 %v46, %v194
    %v196 = vand.u32 %v195, 4294901760
    %v197 = vsub.f32 %v195, %v196
    %v198 = vand.u32 %v197, 4294901760
    %199 = vmatmul.mubr.f32.gmra.mxu0 %v198
    %v200 = vpop.f32.mrf.mxu0
    %v201 = vadd.f32 0.0, %v200
    %v202 = vpop.f32.mrf.mxu0
    %203 = vmatprep.mubr.f32.mxu0 0.0
    %v204 = vand.u32 %v49, 4294901760
    %v205 = vsub.f32 %v49, %v204
    %v206 = vand.u32 %v205, 4294901760
    %v207 = vsub.f32 %v205, %v206
    %v208 = vand.u32 %v207, 4294901760
    %209 = vmatmul.mubr.f32.gmra.mxu0 %v208
    %v210 = vpop.f32.mrf.mxu0
    %v211 = vadd.f32 0.0, %v210
    %v212 = vpop.f32.mrf.mxu0
    %213 = vmatprep.mubr.f32.mxu0 0.0
    %v214 = vand.u32 %v52, 4294901760
    %v215 = vsub.f32 %v52, %v214
    %v216 = vand.u32 %v215, 4294901760
    %v217 = vsub.f32 %v215, %v216
    %v218 = vand.u32 %v217, 4294901760
    %219 = vmatmul.mubr.f32.gmra.mxu0 %v218
    %v220 = vpop.f32.mrf.mxu0
    %v221 = vadd.f32 0.0, %v220
    %v222 = vpop.f32.mrf.mxu0
    %223 = vmatprep.mubr.f32.mxu0 0.0
    %v224 = vand.u32 %v55, 4294901760
    %v225 = vsub.f32 %v55, %v224
    %v226 = vand.u32 %v225, 4294901760
    %v227 = vsub.f32 %v225, %v226
    %v228 = vand.u32 %v227, 4294901760
    %229 = vmatmul.mubr.f32.gmra.mxu0 %v228
    %v230 = vpop.f32.mrf.mxu0
    %v231 = vadd.f32 0.0, %v230
    %v232 = vpop.f32.mrf.mxu0
    %233 = vmatprep.mubr.f32.mxu0 0.0
    %v234 = vand.u32 %v58, 4294901760
    %v235 = vsub.f32 %v58, %v234
    %v236 = vand.u32 %v235, 4294901760
    %v237 = vsub.f32 %v235, %v236
    %v238 = vand.u32 %v237, 4294901760
    %239 = vmatmul.mubr.f32.gmra.mxu0 %v238
    %v240 = vpop.f32.mrf.mxu0
    %v241 = vadd.f32 0.0, %v240
    %v242 = vpop.f32.mrf.mxu0
    %243 = vmatprep.mubr.f32.mxu0 0.0
    %v244 = vand.u32 %v61, 4294901760
    %v245 = vsub.f32 %v61, %v244
    %v246 = vand.u32 %v245, 4294901760
    %v247 = vsub.f32 %v245, %v246
    %v248 = vand.u32 %v247, 4294901760
    %249 = vmatmul.mubr.f32.gmra.mxu0 %v248
    %v250 = vpop.f32.mrf.mxu0
    %v251 = vadd.f32 0.0, %v250
    %v252 = vpop.f32.mrf.mxu0
    %253 = vdwg.mxu0
    %254 = vmatprep.subr.mxu0 0.0
    %255 = vmatpush1.msra.mxu0 0.0
    %256 = vmatprep.subr.mxu0 0.0
    %257 = vmatpush1.msra.mxu0 0.0
    %258 = vmatprep.subr.mxu0 0.0
    %259 = vmatpush1.msra.mxu0 0.0
    %260 = vmatprep.subr.mxu0 0.0
    %261 = vmatpush1.msra.mxu0 0.0
    %262 = vmatprep.subr.mxu0 0.0
    %263 = vmatpush1.msra.mxu0 0.0
    %264 = vmatprep.subr.mxu0 0.0
    %265 = vmatpush1.msra.mxu0 0.0
    %266 = vmatprep.subr.mxu0 0.0
    %267 = vmatpush1.msra.mxu0 0.0
    %268 = vmatprep.subr.mxu0 0.0
    %269 = vmatpush1.msra.mxu0 0.0
    %270 = vmatprep.subr.mxu0 0.0
    %271 = vmatpush1.msra.mxu0 0.0
    %272 = vmatprep.subr.mxu0 0.0
    %273 = vmatpush1.msra.mxu0 0.0
    %274 = vmatprep.subr.mxu0 0.0
    %275 = vmatpush1.msra.mxu0 0.0
    %276 = vmatprep.subr.mxu0 0.0
    %277 = vmatpush1.msra.mxu0 0.0
    %278 = vmatprep.subr.mxu0 0.0
    %279 = vmatpush1.msra.mxu0 0.0
    %280 = vmatprep.subr.mxu0 0.0
    %281 = vmatpush1.msra.mxu0 0.0
    %282 = vmatprep.subr.mxu0 0.0
    %v283 = vand.u32 %v65, 4294901760
    %v284 = vsub.f32 %v65, %v283
    %v285 = vand.u32 %v284, 4294901760
    %v286 = vsub.f32 %v284, %v285
    %v287 = vand.u32 %v286, 4294901760
    %288 = vmatpush1.msra.mxu0 %v287
    %289 = vmatprep.subr.mxu0 0.0
    %v290 = vand.u32 %v24, 4294901760
    %v291 = vsub.f32 %v24, %v290
    %v292 = vand.u32 %v291, 4294901760
    %v293 = vsub.f32 %v291, %v292
    %v294 = vand.u32 %v293, 4294901760
    %295 = vmatpush1.msra.mxu0 %v294
    %296 = vmatprep.subr.mxu0 0.0
    %297 = vmatpush2.msra.mxu0 0.0
    %298 = vmatprep.subr.mxu0 0.0
    %299 = vmatpush2.msra.mxu0 0.0
    %300 = vmatprep.subr.mxu0 0.0
    %301 = vmatpush2.msra.mxu0 0.0
    %302 = vmatprep.subr.mxu0 0.0
    %303 = vmatpush2.msra.mxu0 0.0
    %304 = vmatprep.subr.mxu0 0.0
    %305 = vmatpush2.msra.mxu0 0.0
    %306 = vmatprep.subr.mxu0 0.0
    %307 = vmatpush2.msra.mxu0 0.0
    %308 = vmatprep.subr.mxu0 0.0
    %309 = vmatpush2.msra.mxu0 0.0
    %310 = vmatprep.subr.mxu0 0.0
    %311 = vmatpush2.msra.mxu0 0.0
    %312 = vmatprep.subr.mxu0 0.0
    %313 = vmatpush2.msra.mxu0 0.0
    %314 = vmatprep.subr.mxu0 0.0
    %315 = vmatpush2.msra.mxu0 0.0
    %316 = vmatprep.subr.mxu0 0.0
    %317 = vmatpush2.msra.mxu0 0.0
    %318 = vmatprep.subr.mxu0 0.0
    %319 = vmatpush2.msra.mxu0 0.0
    %320 = vmatprep.subr.mxu0 0.0
    %321 = vmatpush2.msra.mxu0 0.0
    %322 = vmatprep.subr.mxu0 0.0
    %323 = vmatpush2.msra.mxu0 0.0
    %324 = vmatprep.subr.mxu0 0.0
    %325 = vmatpush2.msra.mxu0 0.0
    %326 = vmatprep.subr.mxu0 0.0
    %327 = vmatpush2.msra.mxu0 0.0
    %328 = vmatprep.mubr.f32.mxu0 0.0
    %v329 = vand.u32 %v28, 4294901760
    %330 = vmatmul.mubr.f32.gmra.mxu0 %v329
    %v331 = vpop.f32.mrf.mxu0
    %v332 = vadd.f32 %v141, %v331
    %v333 = vpop.f32.mrf.mxu0
    %334 = vmatprep.mubr.f32.mxu0 0.0
    %v335 = vand.u32 %v31, 4294901760
    %336 = vmatmul.mubr.f32.gmra.mxu0 %v335
    %v337 = vpop.f32.mrf.mxu0
    %v338 = vadd.f32 %v151, %v337
    %v339 = vpop.f32.mrf.mxu0
    %340 = vmatprep.mubr.f32.mxu0 0.0
    %v341 = vand.u32 %v34, 4294901760
    %342 = vmatmul.mubr.f32.gmra.mxu0 %v341
    %v343 = vpop.f32.mrf.mxu0
    %v344 = vadd.f32 %v161, %v343
    %v345 = vpop.f32.mrf.mxu0
    %346 = vmatprep.mubr.f32.mxu0 0.0
    %v347 = vand.u32 %v37, 4294901760
    %348 = vmatmul.mubr.f32.gmra.mxu0 %v347
    %v349 = vpop.f32.mrf.mxu0
    %v350 = vadd.f32 %v171, %v349
    %v351 = vpop.f32.mrf.mxu0
    %352 = vmatprep.mubr.f32.mxu0 0.0
    %v353 = vand.u32 %v40, 4294901760
    %354 = vmatmul.mubr.f32.gmra.mxu0 %v353
    %v355 = vpop.f32.mrf.mxu0
    %v356 = vadd.f32 %v181, %v355
    %v357 = vpop.f32.mrf.mxu0
    %358 = vmatprep.mubr.f32.mxu0 0.0
    %v359 = vand.u32 %v43, 4294901760
    %360 = vmatmul.mubr.f32.gmra.mxu0 %v359
    %v361 = vpop.f32.mrf.mxu0
    %v362 = vadd.f32 %v191, %v361
    %v363 = vpop.f32.mrf.mxu0
    %364 = vmatprep.mubr.f32.mxu0 0.0
    %v365 = vand.u32 %v46, 4294901760
    %366 = vmatmul.mubr.f32.gmra.mxu0 %v365
    %v367 = vpop.f32.mrf.mxu0
    %v368 = vadd.f32 %v201, %v367
    %v369 = vpop.f32.mrf.mxu0
    %370 = vmatprep.mubr.f32.mxu0 0.0
    %v371 = vand.u32 %v49, 4294901760
    %372 = vmatmul.mubr.f32.gmra.mxu0 %v371
    %v373 = vpop.f32.mrf.mxu0
    %v374 = vadd.f32 %v211, %v373
    %v375 = vpop.f32.mrf.mxu0
    %376 = vmatprep.mubr.f32.mxu0 0.0
    %v377 = vand.u32 %v52, 4294901760
    %378 = vmatmul.mubr.f32.gmra.mxu0 %v377
    %v379 = vpop.f32.mrf.mxu0
    %v380 = vadd.f32 %v221, %v379
    %v381 = vpop.f32.mrf.mxu0
    %382 = vmatprep.mubr.f32.mxu0 0.0
    %v383 = vand.u32 %v55, 4294901760
    %384 = vmatmul.mubr.f32.gmra.mxu0 %v383
    %v385 = vpop.f32.mrf.mxu0
    %v386 = vadd.f32 %v231, %v385
    %v387 = vpop.f32.mrf.mxu0
    %388 = vmatprep.mubr.f32.mxu0 0.0
    %v389 = vand.u32 %v58, 4294901760
    %390 = vmatmul.mubr.f32.gmra.mxu0 %v389
    %v391 = vpop.f32.mrf.mxu0
    %v392 = vadd.f32 %v241, %v391
    %v393 = vpop.f32.mrf.mxu0
    %394 = vmatprep.mubr.f32.mxu0 0.0
    %v395 = vand.u32 %v61, 4294901760
    %396 = vmatmul.mubr.f32.gmra.mxu0 %v395
    %v397 = vpop.f32.mrf.mxu0
    %v398 = vadd.f32 %v251, %v397
    %v399 = vpop.f32.mrf.mxu0
    %400 = vdwg.mxu0
    %401 = vmatprep.subr.mxu0 0.0
    %402 = vmatpush1.msra.mxu0 0.0
    %403 = vmatprep.subr.mxu0 0.0
    %404 = vmatpush1.msra.mxu0 0.0
    %405 = vmatprep.subr.mxu0 0.0
    %406 = vmatpush1.msra.mxu0 0.0
    %407 = vmatprep.subr.mxu0 0.0
    %408 = vmatpush1.msra.mxu0 0.0
    %409 = vmatprep.subr.mxu0 0.0
    %410 = vmatpush1.msra.mxu0 0.0
    %411 = vmatprep.subr.mxu0 0.0
    %412 = vmatpush1.msra.mxu0 0.0
    %413 = vmatprep.subr.mxu0 0.0
    %414 = vmatpush1.msra.mxu0 0.0
    %415 = vmatprep.subr.mxu0 0.0
    %416 = vmatpush1.msra.mxu0 0.0
    %417 = vmatprep.subr.mxu0 0.0
    %418 = vmatpush1.msra.mxu0 0.0
    %419 = vmatprep.subr.mxu0 0.0
    %420 = vmatpush1.msra.mxu0 0.0
    %421 = vmatprep.subr.mxu0 0.0
    %422 = vmatpush1.msra.mxu0 0.0
    %423 = vmatprep.subr.mxu0 0.0
    %424 = vmatpush1.msra.mxu0 0.0
    %425 = vmatprep.subr.mxu0 0.0
    %426 = vmatpush1.msra.mxu0 0.0
    %427 = vmatprep.subr.mxu0 0.0
    %428 = vmatpush1.msra.mxu0 0.0
    %429 = vmatprep.subr.mxu0 0.0
    %v430 = vand.u32 %v65, 4294901760
    %v431 = vsub.f32 %v65, %v430
    %432 = vmatpush1.msra.mxu0 %v431
    %433 = vmatprep.subr.mxu0 0.0
    %v434 = vand.u32 %v24, 4294901760
    %v435 = vsub.f32 %v24, %v434
    %436 = vmatpush1.msra.mxu0 %v435
    %437 = vmatprep.subr.mxu0 0.0
    %438 = vmatpush2.msra.mxu0 0.0
    %439 = vmatprep.subr.mxu0 0.0
    %440 = vmatpush2.msra.mxu0 0.0
    %441 = vmatprep.subr.mxu0 0.0
    %442 = vmatpush2.msra.mxu0 0.0
    %443 = vmatprep.subr.mxu0 0.0
    %444 = vmatpush2.msra.mxu0 0.0
    %445 = vmatprep.subr.mxu0 0.0
    %446 = vmatpush2.msra.mxu0 0.0
    %447 = vmatprep.subr.mxu0 0.0
    %448 = vmatpush2.msra.mxu0 0.0
    %449 = vmatprep.subr.mxu0 0.0
    %450 = vmatpush2.msra.mxu0 0.0
    %451 = vmatprep.subr.mxu0 0.0
    %452 = vmatpush2.msra.mxu0 0.0
    %453 = vmatprep.subr.mxu0 0.0
    %454 = vmatpush2.msra.mxu0 0.0
    %455 = vmatprep.subr.mxu0 0.0
    %456 = vmatpush2.msra.mxu0 0.0
    %457 = vmatprep.subr.mxu0 0.0
    %458 = vmatpush2.msra.mxu0 0.0
    %459 = vmatprep.subr.mxu0 0.0
    %460 = vmatpush2.msra.mxu0 0.0
    %461 = vmatprep.subr.mxu0 0.0
    %462 = vmatpush2.msra.mxu0 0.0
    %463 = vmatprep.subr.mxu0 0.0
    %464 = vmatpush2.msra.mxu0 0.0
    %465 = vmatprep.subr.mxu0 0.0
    %466 = vmatpush2.msra.mxu0 0.0
    %467 = vmatprep.subr.mxu0 0.0
    %468 = vmatpush2.msra.mxu0 0.0
    %469 = vmatprep.mubr.f32.mxu0 0.0
    %v470 = vand.u32 %v28, 4294901760
    %v471 = vsub.f32 %v28, %v470
    %472 = vmatmul.mubr.f32.gmra.mxu0 %v471
    %v473 = vpop.f32.mrf.mxu0
    %v474 = vadd.f32 %v332, %v473
    %v475 = vpop.f32.mrf.mxu0
    %476 = vmatprep.mubr.f32.mxu0 0.0
    %v477 = vand.u32 %v31, 4294901760
    %v478 = vsub.f32 %v31, %v477
    %479 = vmatmul.mubr.f32.gmra.mxu0 %v478
    %v480 = vpop.f32.mrf.mxu0
    %v481 = vadd.f32 %v338, %v480
    %v482 = vpop.f32.mrf.mxu0
    %483 = vmatprep.mubr.f32.mxu0 0.0
    %v484 = vand.u32 %v34, 4294901760
    %v485 = vsub.f32 %v34, %v484
    %486 = vmatmul.mubr.f32.gmra.mxu0 %v485
    %v487 = vpop.f32.mrf.mxu0
    %v488 = vadd.f32 %v344, %v487
    %v489 = vpop.f32.mrf.mxu0
    %490 = vmatprep.mubr.f32.mxu0 0.0
    %v491 = vand.u32 %v37, 4294901760
    %v492 = vsub.f32 %v37, %v491
    %493 = vmatmul.mubr.f32.gmra.mxu0 %v492
    %v494 = vpop.f32.mrf.mxu0
    %v495 = vadd.f32 %v350, %v494
    %v496 = vpop.f32.mrf.mxu0
    %497 = vmatprep.mubr.f32.mxu0 0.0
    %v498 = vand.u32 %v40, 4294901760
    %v499 = vsub.f32 %v40, %v498
    %500 = vmatmul.mubr.f32.gmra.mxu0 %v499
    %v501 = vpop.f32.mrf.mxu0
    %v502 = vadd.f32 %v356, %v501
    %v503 = vpop.f32.mrf.mxu0
    %504 = vmatprep.mubr.f32.mxu0 0.0
    %v505 = vand.u32 %v43, 4294901760
    %v506 = vsub.f32 %v43, %v505
    %507 = vmatmul.mubr.f32.gmra.mxu0 %v506
    %v508 = vpop.f32.mrf.mxu0
    %v509 = vadd.f32 %v362, %v508
    %v510 = vpop.f32.mrf.mxu0
    %511 = vmatprep.mubr.f32.mxu0 0.0
    %v512 = vand.u32 %v46, 4294901760
    %v513 = vsub.f32 %v46, %v512
    %514 = vmatmul.mubr.f32.gmra.mxu0 %v513
    %v515 = vpop.f32.mrf.mxu0
    %v516 = vadd.f32 %v368, %v515
    %v517 = vpop.f32.mrf.mxu0
    %518 = vmatprep.mubr.f32.mxu0 0.0
    %v519 = vand.u32 %v49, 4294901760
    %v520 = vsub.f32 %v49, %v519
    %521 = vmatmul.mubr.f32.gmra.mxu0 %v520
    %v522 = vpop.f32.mrf.mxu0
    %v523 = vadd.f32 %v374, %v522
    %v524 = vpop.f32.mrf.mxu0
    %525 = vmatprep.mubr.f32.mxu0 0.0
    %v526 = vand.u32 %v52, 4294901760
    %v527 = vsub.f32 %v52, %v526
    %528 = vmatmul.mubr.f32.gmra.mxu0 %v527
    %v529 = vpop.f32.mrf.mxu0
    %v530 = vadd.f32 %v380, %v529
    %v531 = vpop.f32.mrf.mxu0
    %532 = vmatprep.mubr.f32.mxu0 0.0
    %v533 = vand.u32 %v55, 4294901760
    %v534 = vsub.f32 %v55, %v533
    %535 = vmatmul.mubr.f32.gmra.mxu0 %v534
    %v536 = vpop.f32.mrf.mxu0
    %v537 = vadd.f32 %v386, %v536
    %v538 = vpop.f32.mrf.mxu0
    %539 = vmatprep.mubr.f32.mxu0 0.0
    %v540 = vand.u32 %v58, 4294901760
    %v541 = vsub.f32 %v58, %v540
    %542 = vmatmul.mubr.f32.gmra.mxu0 %v541
    %v543 = vpop.f32.mrf.mxu0
    %v544 = vadd.f32 %v392, %v543
    %v545 = vpop.f32.mrf.mxu0
    %546 = vmatprep.mubr.f32.mxu0 0.0
    %v547 = vand.u32 %v61, 4294901760
    %v548 = vsub.f32 %v61, %v547
    %549 = vmatmul.mubr.f32.gmra.mxu0 %v548
    %v550 = vpop.f32.mrf.mxu0
    %v551 = vadd.f32 %v398, %v550
    %v552 = vpop.f32.mrf.mxu0
    %553 = vdwg.mxu0
    %554 = vmatprep.subr.mxu0 0.0
    %555 = vmatpush1.msra.mxu0 0.0
    %556 = vmatprep.subr.mxu0 0.0
    %557 = vmatpush1.msra.mxu0 0.0
    %558 = vmatprep.subr.mxu0 0.0
    %559 = vmatpush1.msra.mxu0 0.0
    %560 = vmatprep.subr.mxu0 0.0
    %561 = vmatpush1.msra.mxu0 0.0
    %562 = vmatprep.subr.mxu0 0.0
    %563 = vmatpush1.msra.mxu0 0.0
    %564 = vmatprep.subr.mxu0 0.0
    %565 = vmatpush1.msra.mxu0 0.0
    %566 = vmatprep.subr.mxu0 0.0
    %567 = vmatpush1.msra.mxu0 0.0
    %568 = vmatprep.subr.mxu0 0.0
    %569 = vmatpush1.msra.mxu0 0.0
    %570 = vmatprep.subr.mxu0 0.0
    %571 = vmatpush1.msra.mxu0 0.0
    %572 = vmatprep.subr.mxu0 0.0
    %573 = vmatpush1.msra.mxu0 0.0
    %574 = vmatprep.subr.mxu0 0.0
    %575 = vmatpush1.msra.mxu0 0.0
    %576 = vmatprep.subr.mxu0 0.0
    %577 = vmatpush1.msra.mxu0 0.0
    %578 = vmatprep.subr.mxu0 0.0
    %579 = vmatpush1.msra.mxu0 0.0
    %580 = vmatprep.subr.mxu0 0.0
    %581 = vmatpush1.msra.mxu0 0.0
    %582 = vmatprep.subr.mxu0 0.0
    %v583 = vand.u32 %v65, 4294901760
    %584 = vmatpush1.msra.mxu0 %v583
    %585 = vmatprep.subr.mxu0 0.0
    %v586 = vand.u32 %v24, 4294901760
    %587 = vmatpush1.msra.mxu0 %v586
    %588 = vmatprep.subr.mxu0 0.0
    %589 = vmatpush2.msra.mxu0 0.0
    %590 = vmatprep.subr.mxu0 0.0
    %591 = vmatpush2.msra.mxu0 0.0
    %592 = vmatprep.subr.mxu0 0.0
    %593 = vmatpush2.msra.mxu0 0.0
    %594 = vmatprep.subr.mxu0 0.0
    %595 = vmatpush2.msra.mxu0 0.0
    %596 = vmatprep.subr.mxu0 0.0
    %597 = vmatpush2.msra.mxu0 0.0
    %598 = vmatprep.subr.mxu0 0.0
    %599 = vmatpush2.msra.mxu0 0.0
    %600 = vmatprep.subr.mxu0 0.0
    %601 = vmatpush2.msra.mxu0 0.0
    %602 = vmatprep.subr.mxu0 0.0
    %603 = vmatpush2.msra.mxu0 0.0
    %604 = vmatprep.subr.mxu0 0.0
    %605 = vmatpush2.msra.mxu0 0.0
    %606 = vmatprep.subr.mxu0 0.0
    %607 = vmatpush2.msra.mxu0 0.0
    %608 = vmatprep.subr.mxu0 0.0
    %609 = vmatpush2.msra.mxu0 0.0
    %610 = vmatprep.subr.mxu0 0.0
    %611 = vmatpush2.msra.mxu0 0.0
    %612 = vmatprep.subr.mxu0 0.0
    %613 = vmatpush2.msra.mxu0 0.0
    %614 = vmatprep.subr.mxu0 0.0
    %615 = vmatpush2.msra.mxu0 0.0
    %616 = vmatprep.subr.mxu0 0.0
    %617 = vmatpush2.msra.mxu0 0.0
    %618 = vmatprep.subr.mxu0 0.0
    %619 = vmatpush2.msra.mxu0 0.0
    %620 = vmatprep.mubr.f32.mxu0 0.0
    %v621 = vand.u32 %v28, 4294901760
    %v622 = vsub.f32 %v28, %v621
    %v623 = vand.u32 %v622, 4294901760
    %624 = vmatmul.mubr.f32.gmra.mxu0 %v623
    %v625 = vpop.f32.mrf.mxu0
    %v626 = vadd.f32 %v474, %v625
    %v627 = vpop.f32.mrf.mxu0
    %628 = vmatprep.mubr.f32.mxu0 0.0
    %v629 = vand.u32 %v31, 4294901760
    %v630 = vsub.f32 %v31, %v629
    %v631 = vand.u32 %v630, 4294901760
    %632 = vmatmul.mubr.f32.gmra.mxu0 %v631
    %v633 = vpop.f32.mrf.mxu0
    %v634 = vadd.f32 %v481, %v633
    %v635 = vpop.f32.mrf.mxu0
    %636 = vmatprep.mubr.f32.mxu0 0.0
    %v637 = vand.u32 %v34, 4294901760
    %v638 = vsub.f32 %v34, %v637
    %v639 = vand.u32 %v638, 4294901760
    %640 = vmatmul.mubr.f32.gmra.mxu0 %v639
    %v641 = vpop.f32.mrf.mxu0
    %v642 = vadd.f32 %v488, %v641
    %v643 = vpop.f32.mrf.mxu0
    %644 = vmatprep.mubr.f32.mxu0 0.0
    %v645 = vand.u32 %v37, 4294901760
    %v646 = vsub.f32 %v37, %v645
    %v647 = vand.u32 %v646, 4294901760
    %648 = vmatmul.mubr.f32.gmra.mxu0 %v647
    %v649 = vpop.f32.mrf.mxu0
    %v650 = vadd.f32 %v495, %v649
    %v651 = vpop.f32.mrf.mxu0
    %652 = vmatprep.mubr.f32.mxu0 0.0
    %v653 = vand.u32 %v40, 4294901760
    %v654 = vsub.f32 %v40, %v653
    %v655 = vand.u32 %v654, 4294901760
    %656 = vmatmul.mubr.f32.gmra.mxu0 %v655
    %v657 = vpop.f32.mrf.mxu0
    %v658 = vadd.f32 %v502, %v657
    %v659 = vpop.f32.mrf.mxu0
    %660 = vmatprep.mubr.f32.mxu0 0.0
    %v661 = vand.u32 %v43, 4294901760
    %v662 = vsub.f32 %v43, %v661
    %v663 = vand.u32 %v662, 4294901760
    %664 = vmatmul.mubr.f32.gmra.mxu0 %v663
    %v665 = vpop.f32.mrf.mxu0
    %v666 = vadd.f32 %v509, %v665
    %v667 = vpop.f32.mrf.mxu0
    %668 = vmatprep.mubr.f32.mxu0 0.0
    %v669 = vand.u32 %v46, 4294901760
    %v670 = vsub.f32 %v46, %v669
    %v671 = vand.u32 %v670, 4294901760
    %672 = vmatmul.mubr.f32.gmra.mxu0 %v671
    %v673 = vpop.f32.mrf.mxu0
    %v674 = vadd.f32 %v516, %v673
    %v675 = vpop.f32.mrf.mxu0
    %676 = vmatprep.mubr.f32.mxu0 0.0
    %v677 = vand.u32 %v49, 4294901760
    %v678 = vsub.f32 %v49, %v677
    %v679 = vand.u32 %v678, 4294901760
    %680 = vmatmul.mubr.f32.gmra.mxu0 %v679
    %v681 = vpop.f32.mrf.mxu0
    %v682 = vadd.f32 %v523, %v681
    %v683 = vpop.f32.mrf.mxu0
    %684 = vmatprep.mubr.f32.mxu0 0.0
    %v685 = vand.u32 %v52, 4294901760
    %v686 = vsub.f32 %v52, %v685
    %v687 = vand.u32 %v686, 4294901760
    %688 = vmatmul.mubr.f32.gmra.mxu0 %v687
    %v689 = vpop.f32.mrf.mxu0
    %v690 = vadd.f32 %v530, %v689
    %v691 = vpop.f32.mrf.mxu0
    %692 = vmatprep.mubr.f32.mxu0 0.0
    %v693 = vand.u32 %v55, 4294901760
    %v694 = vsub.f32 %v55, %v693
    %v695 = vand.u32 %v694, 4294901760
    %696 = vmatmul.mubr.f32.gmra.mxu0 %v695
    %v697 = vpop.f32.mrf.mxu0
    %v698 = vadd.f32 %v537, %v697
    %v699 = vpop.f32.mrf.mxu0
    %700 = vmatprep.mubr.f32.mxu0 0.0
    %v701 = vand.u32 %v58, 4294901760
    %v702 = vsub.f32 %v58, %v701
    %v703 = vand.u32 %v702, 4294901760
    %704 = vmatmul.mubr.f32.gmra.mxu0 %v703
    %v705 = vpop.f32.mrf.mxu0
    %v706 = vadd.f32 %v544, %v705
    %v707 = vpop.f32.mrf.mxu0
    %708 = vmatprep.mubr.f32.mxu0 0.0
    %v709 = vand.u32 %v61, 4294901760
    %v710 = vsub.f32 %v61, %v709
    %v711 = vand.u32 %v710, 4294901760
    %712 = vmatmul.mubr.f32.gmra.mxu0 %v711
    %v713 = vpop.f32.mrf.mxu0
    %v714 = vadd.f32 %v551, %v713
    %v715 = vpop.f32.mrf.mxu0
    %716 = vdwg.mxu0
    %717 = vmatprep.subr.mxu0 0.0
    %718 = vmatpush1.msra.mxu0 0.0
    %719 = vmatprep.subr.mxu0 0.0
    %720 = vmatpush1.msra.mxu0 0.0
    %721 = vmatprep.subr.mxu0 0.0
    %722 = vmatpush1.msra.mxu0 0.0
    %723 = vmatprep.subr.mxu0 0.0
    %724 = vmatpush1.msra.mxu0 0.0
    %725 = vmatprep.subr.mxu0 0.0
    %726 = vmatpush1.msra.mxu0 0.0
    %727 = vmatprep.subr.mxu0 0.0
    %728 = vmatpush1.msra.mxu0 0.0
    %729 = vmatprep.subr.mxu0 0.0
    %730 = vmatpush1.msra.mxu0 0.0
    %731 = vmatprep.subr.mxu0 0.0
    %732 = vmatpush1.msra.mxu0 0.0
    %733 = vmatprep.subr.mxu0 0.0
    %734 = vmatpush1.msra.mxu0 0.0
    %735 = vmatprep.subr.mxu0 0.0
    %736 = vmatpush1.msra.mxu0 0.0
    %737 = vmatprep.subr.mxu0 0.0
    %738 = vmatpush1.msra.mxu0 0.0
    %739 = vmatprep.subr.mxu0 0.0
    %740 = vmatpush1.msra.mxu0 0.0
    %741 = vmatprep.subr.mxu0 0.0
    %742 = vmatpush1.msra.mxu0 0.0
    %743 = vmatprep.subr.mxu0 0.0
    %744 = vmatpush1.msra.mxu0 0.0
    %745 = vmatprep.subr.mxu0 0.0
    %v746 = vand.u32 %v65, 4294901760
    %v747 = vsub.f32 %v65, %v746
    %v748 = vand.u32 %v747, 4294901760
    %749 = vmatpush1.msra.mxu0 %v748
    %750 = vmatprep.subr.mxu0 0.0
    %v751 = vand.u32 %v24, 4294901760
    %v752 = vsub.f32 %v24, %v751
    %v753 = vand.u32 %v752, 4294901760
    %754 = vmatpush1.msra.mxu0 %v753
    %755 = vmatprep.subr.mxu0 0.0
    %756 = vmatpush2.msra.mxu0 0.0
    %757 = vmatprep.subr.mxu0 0.0
    %758 = vmatpush2.msra.mxu0 0.0
    %759 = vmatprep.subr.mxu0 0.0
    %760 = vmatpush2.msra.mxu0 0.0
    %761 = vmatprep.subr.mxu0 0.0
    %762 = vmatpush2.msra.mxu0 0.0
    %763 = vmatprep.subr.mxu0 0.0
    %764 = vmatpush2.msra.mxu0 0.0
    %765 = vmatprep.subr.mxu0 0.0
    %766 = vmatpush2.msra.mxu0 0.0
    %767 = vmatprep.subr.mxu0 0.0
    %768 = vmatpush2.msra.mxu0 0.0
    %769 = vmatprep.subr.mxu0 0.0
    %770 = vmatpush2.msra.mxu0 0.0
    %771 = vmatprep.subr.mxu0 0.0
    %772 = vmatpush2.msra.mxu0 0.0
    %773 = vmatprep.subr.mxu0 0.0
    %774 = vmatpush2.msra.mxu0 0.0
    %775 = vmatprep.subr.mxu0 0.0
    %776 = vmatpush2.msra.mxu0 0.0
    %777 = vmatprep.subr.mxu0 0.0
    %778 = vmatpush2.msra.mxu0 0.0
    %779 = vmatprep.subr.mxu0 0.0
    %780 = vmatpush2.msra.mxu0 0.0
    %781 = vmatprep.subr.mxu0 0.0
    %782 = vmatpush2.msra.mxu0 0.0
    %783 = vmatprep.subr.mxu0 0.0
    %784 = vmatpush2.msra.mxu0 0.0
    %785 = vmatprep.subr.mxu0 0.0
    %786 = vmatpush2.msra.mxu0 0.0
    %787 = vmatprep.mubr.f32.mxu0 0.0
    %v788 = vand.u32 %v28, 4294901760
    %789 = vmatmul.mubr.f32.gmra.mxu0 %v788
    %v790 = vpop.f32.mrf.mxu0
    %v791 = vadd.f32 %v626, %v790
    %v792 = vpop.f32.mrf.mxu0
    %793 = vmatprep.mubr.f32.mxu0 0.0
    %v794 = vand.u32 %v31, 4294901760
    %795 = vmatmul.mubr.f32.gmra.mxu0 %v794
    %v796 = vpop.f32.mrf.mxu0
    %v797 = vadd.f32 %v634, %v796
    %v798 = vpop.f32.mrf.mxu0
    %799 = vmatprep.mubr.f32.mxu0 0.0
    %v800 = vand.u32 %v34, 4294901760
    %801 = vmatmul.mubr.f32.gmra.mxu0 %v800
    %v802 = vpop.f32.mrf.mxu0
    %v803 = vadd.f32 %v642, %v802
    %v804 = vpop.f32.mrf.mxu0
    %805 = vmatprep.mubr.f32.mxu0 0.0
    %v806 = vand.u32 %v37, 4294901760
    %807 = vmatmul.mubr.f32.gmra.mxu0 %v806
    %v808 = vpop.f32.mrf.mxu0
    %v809 = vadd.f32 %v650, %v808
    %v810 = vpop.f32.mrf.mxu0
    %811 = vmatprep.mubr.f32.mxu0 0.0
    %v812 = vand.u32 %v40, 4294901760
    %813 = vmatmul.mubr.f32.gmra.mxu0 %v812
    %v814 = vpop.f32.mrf.mxu0
    %v815 = vadd.f32 %v658, %v814
    %v816 = vpop.f32.mrf.mxu0
    %817 = vmatprep.mubr.f32.mxu0 0.0
    %v818 = vand.u32 %v43, 4294901760
    %819 = vmatmul.mubr.f32.gmra.mxu0 %v818
    %v820 = vpop.f32.mrf.mxu0
    %v821 = vadd.f32 %v666, %v820
    %v822 = vpop.f32.mrf.mxu0
    %823 = vmatprep.mubr.f32.mxu0 0.0
    %v824 = vand.u32 %v46, 4294901760
    %825 = vmatmul.mubr.f32.gmra.mxu0 %v824
    %v826 = vpop.f32.mrf.mxu0
    %v827 = vadd.f32 %v674, %v826
    %v828 = vpop.f32.mrf.mxu0
    %829 = vmatprep.mubr.f32.mxu0 0.0
    %v830 = vand.u32 %v49, 4294901760
    %831 = vmatmul.mubr.f32.gmra.mxu0 %v830
    %v832 = vpop.f32.mrf.mxu0
    %v833 = vadd.f32 %v682, %v832
    %v834 = vpop.f32.mrf.mxu0
    %835 = vmatprep.mubr.f32.mxu0 0.0
    %v836 = vand.u32 %v52, 4294901760
    %837 = vmatmul.mubr.f32.gmra.mxu0 %v836
    %v838 = vpop.f32.mrf.mxu0
    %v839 = vadd.f32 %v690, %v838
    %v840 = vpop.f32.mrf.mxu0
    %841 = vmatprep.mubr.f32.mxu0 0.0
    %v842 = vand.u32 %v55, 4294901760
    %843 = vmatmul.mubr.f32.gmra.mxu0 %v842
    %v844 = vpop.f32.mrf.mxu0
    %v845 = vadd.f32 %v698, %v844
    %v846 = vpop.f32.mrf.mxu0
    %847 = vmatprep.mubr.f32.mxu0 0.0
    %v848 = vand.u32 %v58, 4294901760
    %849 = vmatmul.mubr.f32.gmra.mxu0 %v848
    %v850 = vpop.f32.mrf.mxu0
    %v851 = vadd.f32 %v706, %v850
    %v852 = vpop.f32.mrf.mxu0
    %853 = vmatprep.mubr.f32.mxu0 0.0
    %v854 = vand.u32 %v61, 4294901760
    %855 = vmatmul.mubr.f32.gmra.mxu0 %v854
    %v856 = vpop.f32.mrf.mxu0
    %v857 = vadd.f32 %v714, %v856
    %v858 = vpop.f32.mrf.mxu0
    %859 = vdwg.mxu0
    %860 = vmatprep.subr.mxu0 0.0
    %861 = vmatpush1.msra.mxu0 0.0
    %862 = vmatprep.subr.mxu0 0.0
    %863 = vmatpush1.msra.mxu0 0.0
    %864 = vmatprep.subr.mxu0 0.0
    %865 = vmatpush1.msra.mxu0 0.0
    %866 = vmatprep.subr.mxu0 0.0
    %867 = vmatpush1.msra.mxu0 0.0
    %868 = vmatprep.subr.mxu0 0.0
    %869 = vmatpush1.msra.mxu0 0.0
    %870 = vmatprep.subr.mxu0 0.0
    %871 = vmatpush1.msra.mxu0 0.0
    %872 = vmatprep.subr.mxu0 0.0
    %873 = vmatpush1.msra.mxu0 0.0
    %874 = vmatprep.subr.mxu0 0.0
    %875 = vmatpush1.msra.mxu0 0.0
    %876 = vmatprep.subr.mxu0 0.0
    %877 = vmatpush1.msra.mxu0 0.0
    %878 = vmatprep.subr.mxu0 0.0
    %879 = vmatpush1.msra.mxu0 0.0
    %880 = vmatprep.subr.mxu0 0.0
    %881 = vmatpush1.msra.mxu0 0.0
    %882 = vmatprep.subr.mxu0 0.0
    %883 = vmatpush1.msra.mxu0 0.0
    %884 = vmatprep.subr.mxu0 0.0
    %885 = vmatpush1.msra.mxu0 0.0
    %886 = vmatprep.subr.mxu0 0.0
    %887 = vmatpush1.msra.mxu0 0.0
    %888 = vmatprep.subr.mxu0 0.0
    %v889 = vand.u32 %v65, 4294901760
    %890 = vmatpush1.msra.mxu0 %v889
    %891 = vmatprep.subr.mxu0 0.0
    %v892 = vand.u32 %v24, 4294901760
    %893 = vmatpush1.msra.mxu0 %v892
    %894 = vmatprep.subr.mxu0 0.0
    %895 = vmatpush2.msra.mxu0 0.0
    %896 = vmatprep.subr.mxu0 0.0
    %897 = vmatpush2.msra.mxu0 0.0
    %898 = vmatprep.subr.mxu0 0.0
    %899 = vmatpush2.msra.mxu0 0.0
    %900 = vmatprep.subr.mxu0 0.0
    %901 = vmatpush2.msra.mxu0 0.0
    %902 = vmatprep.subr.mxu0 0.0
    %903 = vmatpush2.msra.mxu0 0.0
    %904 = vmatprep.subr.mxu0 0.0
    %905 = vmatpush2.msra.mxu0 0.0
    %906 = vmatprep.subr.mxu0 0.0
    %907 = vmatpush2.msra.mxu0 0.0
    %908 = vmatprep.subr.mxu0 0.0
    %909 = vmatpush2.msra.mxu0 0.0
    %910 = vmatprep.subr.mxu0 0.0
    %911 = vmatpush2.msra.mxu0 0.0
    %912 = vmatprep.subr.mxu0 0.0
    %913 = vmatpush2.msra.mxu0 0.0
    %914 = vmatprep.subr.mxu0 0.0
    %915 = vmatpush2.msra.mxu0 0.0
    %916 = vmatprep.subr.mxu0 0.0
    %917 = vmatpush2.msra.mxu0 0.0
    %918 = vmatprep.subr.mxu0 0.0
    %919 = vmatpush2.msra.mxu0 0.0
    %920 = vmatprep.subr.mxu0 0.0
    %921 = vmatpush2.msra.mxu0 0.0
    %922 = vmatprep.subr.mxu0 0.0
    %923 = vmatpush2.msra.mxu0 0.0
    %924 = vmatprep.subr.mxu0 0.0
    %925 = vmatpush2.msra.mxu0 0.0
    %926 = vmatprep.mubr.f32.mxu0 0.0
    %v927 = vand.u32 %v28, 4294901760
    %928 = vmatmul.mubr.f32.gmra.mxu0 %v927
    %v929 = vpop.f32.mrf.mxu0
    %v930 = vadd.f32 %v791, %v929
    %v931 = vpop.f32.mrf.mxu0
    %932 = vmatprep.mubr.f32.mxu0 0.0
    %v933 = vand.u32 %v31, 4294901760
    %934 = vmatmul.mubr.f32.gmra.mxu0 %v933
    %v935 = vpop.f32.mrf.mxu0
    %v936 = vadd.f32 %v797, %v935
    %v937 = vpop.f32.mrf.mxu0
    %938 = vmatprep.mubr.f32.mxu0 0.0
    %v939 = vand.u32 %v34, 4294901760
    %940 = vmatmul.mubr.f32.gmra.mxu0 %v939
    %v941 = vpop.f32.mrf.mxu0
    %v942 = vadd.f32 %v803, %v941
    %v943 = vpop.f32.mrf.mxu0
    %944 = vmatprep.mubr.f32.mxu0 0.0
    %v945 = vand.u32 %v37, 4294901760
    %946 = vmatmul.mubr.f32.gmra.mxu0 %v945
    %v947 = vpop.f32.mrf.mxu0
    %v948 = vadd.f32 %v809, %v947
    %v949 = vpop.f32.mrf.mxu0
    %950 = vmatprep.mubr.f32.mxu0 0.0
    %v951 = vand.u32 %v40, 4294901760
    %952 = vmatmul.mubr.f32.gmra.mxu0 %v951
    %v953 = vpop.f32.mrf.mxu0
    %v954 = vadd.f32 %v815, %v953
    %v955 = vpop.f32.mrf.mxu0
    %956 = vmatprep.mubr.f32.mxu0 0.0
    %v957 = vand.u32 %v43, 4294901760
    %958 = vmatmul.mubr.f32.gmra.mxu0 %v957
    %v959 = vpop.f32.mrf.mxu0
    %v960 = vadd.f32 %v821, %v959
    %v961 = vpop.f32.mrf.mxu0
    %962 = vmatprep.mubr.f32.mxu0 0.0
    %v963 = vand.u32 %v46, 4294901760
    %964 = vmatmul.mubr.f32.gmra.mxu0 %v963
    %v965 = vpop.f32.mrf.mxu0
    %v966 = vadd.f32 %v827, %v965
    %v967 = vpop.f32.mrf.mxu0
    %968 = vmatprep.mubr.f32.mxu0 0.0
    %v969 = vand.u32 %v49, 4294901760
    %970 = vmatmul.mubr.f32.gmra.mxu0 %v969
    %v971 = vpop.f32.mrf.mxu0
    %v972 = vadd.f32 %v833, %v971
    %v973 = vpop.f32.mrf.mxu0
    %974 = vmatprep.mubr.f32.mxu0 0.0
    %v975 = vand.u32 %v52, 4294901760
    %976 = vmatmul.mubr.f32.gmra.mxu0 %v975
    %v977 = vpop.f32.mrf.mxu0
    %v978 = vadd.f32 %v839, %v977
    %v979 = vpop.f32.mrf.mxu0
    %980 = vmatprep.mubr.f32.mxu0 0.0
    %v981 = vand.u32 %v55, 4294901760
    %982 = vmatmul.mubr.f32.gmra.mxu0 %v981
    %v983 = vpop.f32.mrf.mxu0
    %v984 = vadd.f32 %v845, %v983
    %v985 = vpop.f32.mrf.mxu0
    %986 = vmatprep.mubr.f32.mxu0 0.0
    %v987 = vand.u32 %v58, 4294901760
    %988 = vmatmul.mubr.f32.gmra.mxu0 %v987
    %v989 = vpop.f32.mrf.mxu0
    %v990 = vadd.f32 %v851, %v989
    %v991 = vpop.f32.mrf.mxu0
    %992 = vmatprep.mubr.f32.mxu0 0.0
    %v993 = vand.u32 %v61, 4294901760
    %994 = vmatmul.mubr.f32.gmra.mxu0 %v993
    %v995 = vpop.f32.mrf.mxu0
    %v996 = vadd.f32 %v857, %v995
    %v997 = vpop.f32.mrf.mxu0
    %998 = vdwg.mxu0
    %999 = vst [vmem:[#allocation2] sm:$0xff] %v930
    %1000 = vst [vmem:[#allocation2 + $0x8] sm:$0xff] %v936
    %1001 = vst [vmem:[#allocation2 + $0x10] sm:$0xff] %v942
    %1002 = vst [vmem:[#allocation2 + $0x18] sm:$0xff] %v948
    %1003 = vst [vmem:[#allocation2 + $0x20] sm:$0xff] %v954
    %1004 = vst [vmem:[#allocation2 + $0x28] sm:$0xff] %v960
    %1005 = vst [vmem:[#allocation2 + $0x30] sm:$0xff] %v966
    %1006 = vst [vmem:[#allocation2 + $0x38] sm:$0xff] %v972
    %1007 = vst [vmem:[#allocation2 + $0x40] sm:$0xff] %v978
    %1008 = vst [vmem:[#allocation2 + $0x48] sm:$0xff] %v984
    %1009 = vst [vmem:[#allocation2 + $0x50] sm:$0xff] %v990
    %1010 = vst [vmem:[#allocation2 + $0x58] sm:$0xff] %v996
    // Predicated region
    $region10: #{tpu_custom_call.1} parent=1 // pred_check
      _
    $region11: #{tpu_custom_call.1} parent=1 // pred_check_branch
      %1012 = sbr.rel (0) target = $region13
    $region12: #{tpu_custom_call.1} parent=1 // pred_region
      %s1014 = ssub.s32 1536, 1536
      %1015 = vsyncadd [#allocation3], %s1014
      %s1016 = sshll.u32 [#allocation2], 4
      %s1017 = int_to_ptr.vmem [resolvable:$true] %s1016
      %1022 = dma.vmem_to_hbm [thread:$0]  %s1017, 1536, %s2, [#allocation3], 128, 128, 8
    $region13: #{tpu_custom_call.1} parent=1 // pred_fallthru
      _
    // Predicated region
    $region14: #{tpu_custom_call.1} parent=1 // pred_check
      _
    $region15: #{tpu_custom_call.1} parent=1 // pred_check_branch
      %1024 = sbr.rel (0) target = $region17
    $region16: #{tpu_custom_call.1} parent=1 // pred_region
      %1025 = dma.done [#allocation3], 1536
    $region17: #{tpu_custom_call.1} parent=1 // pred_fallthru
      _
    %1026 = vsyncpa [#allocation3], 1

</llo_original>
